<compile_context>
chip_gen: v7x
topology: tpu7x:2x2x1
jax: 0.10.0
libtpu: 0.0.40
codegen_flags: <defaults>
</compile_context>

<pallas_src>
import jax
import jax.numpy as jnp
from jax.experimental import pallas as pl
from jax.experimental.pallas import tpu as pltpu

# Synthetic environment sizes (classic CartPole-style DQN)
N_STATES = 4      # env.observation_space.shape[0]
N_ACTIONS = 2     # env.action_space.n
HIDDEN = 10

# Flat SMEM parameter-slab layout (row-major PyTorch weight order).
_OFF_W1 = 0                                  # (HIDDEN, N_STATES) -> 40
_OFF_B1 = _OFF_W1 + HIDDEN * N_STATES        # (HIDDEN,)          -> 10
_OFF_W2 = _OFF_B1 + HIDDEN                   # (N_ACTIONS, HIDDEN)-> 20
_OFF_B2 = _OFF_W2 + N_ACTIONS * HIDDEN       # (N_ACTIONS,)       ->  2
N_PARAMS = _OFF_B2 + N_ACTIONS               # 72


def _round_up(n, m):
    return ((n + m - 1) // m) * m


def _choose_tile(b):
    """Batch tile (lanes per grid step): multiple of 128, >=2 tiles past 512."""
    if b <= 512:
        return _round_up(max(b, 1), 128)
    return min(4096, _round_up(-(-b // 2), 128))


def pack_params(w1, b1, w2, b2):
    """Pack PyTorch-layout params into a flat f32[72] slab (call once per update)."""
    return jnp.concatenate([
        w1.reshape(-1).astype(jnp.float32),   # (HIDDEN, N_STATES) row-major
        b1.reshape(-1).astype(jnp.float32),
        w2.reshape(-1).astype(jnp.float32),   # (N_ACTIONS, HIDDEN) row-major
        b2.reshape(-1).astype(jnp.float32),
    ])


def dqn_net_kernel(x_ref, p_ref, o_ref):
    # x_ref: (N_STATES, tile_b) VMEM, batch along lanes
    # p_ref: (N_PARAMS,) SMEM, scalar weights
    # o_ref: (N_ACTIONS, tile_b) VMEM
    x_rows = [x_ref[k:k + 1, :] for k in range(N_STATES)]      # each (1, tb)

    # fc1 + tanh: one hidden row at a time, scalar-weight x row-vector FMAs.
    t_rows = []
    for j in range(HIDDEN):
        h = x_rows[0] * p_ref[_OFF_W1 + j * N_STATES]
        for k in range(1, N_STATES):
            h = h + x_rows[k] * p_ref[_OFF_W1 + j * N_STATES + k]
        h = h + p_ref[_OFF_B1 + j]
        t_rows.append(jnp.tanh(h))

    # out layer: scalar-weight x row-vector FMAs over the 10 hidden rows.
    for a in range(N_ACTIONS):
        o = t_rows[0] * p_ref[_OFF_W2 + a * HIDDEN]
        for j in range(1, HIDDEN):
            o = o + t_rows[j] * p_ref[_OFF_W2 + a * HIDDEN + j]
        o = o + p_ref[_OFF_B2 + a]
        o_ref[a:a + 1, :] = o.astype(o_ref.dtype)


@jax.jit
def dqn_net_forward(params, x):
    """Forward pass of Net: tanh(x @ w1.T + b1) @ w2.T + b2."""
    B = x.shape[0]
    tb = _choose_tile(B)
    b_pad = _round_up(B, tb)

    # Batch-in-lanes layout: (N_STATES, b_pad), lane-dense blocks.
    x_t = x.astype(jnp.float32).T
    if b_pad != B:
        x_t = jnp.pad(x_t, ((0, 0), (0, b_pad - B)))

    out_t = pl.pallas_call(
        dqn_net_kernel,
        out_shape=jax.ShapeDtypeStruct((N_ACTIONS, b_pad), jnp.float32),
        grid=(b_pad // tb,),
        in_specs=[
            pl.BlockSpec((N_STATES, tb), lambda i: (0, i)),
            pl.BlockSpec(memory_space=pltpu.MemorySpace.SMEM),   # scalar params
        ],
        out_specs=pl.BlockSpec((N_ACTIONS, tb), lambda i: (0, i)),
        compiler_params=pltpu.CompilerParams(
            dimension_semantics=("parallel",)),
    )(x_t, params)

    return out_t[:, :B].T                      # (B, N_ACTIONS)


def init_params(key):
    k1, k2, k3, k4 = jax.random.split(key, 4)
    # weight.data.normal_(0, 0.1) for both layers
    w1 = 0.1 * jax.random.normal(k1, (HIDDEN, N_STATES), dtype=jnp.float32)
    w2 = 0.1 * jax.random.normal(k2, (N_ACTIONS, HIDDEN), dtype=jnp.float32)
    # PyTorch Linear default bias init: U(-1/sqrt(fan_in), 1/sqrt(fan_in))
    bound1 = 1.0 / jnp.sqrt(jnp.float32(N_STATES))
    bound2 = 1.0 / jnp.sqrt(jnp.float32(HIDDEN))
    b1 = jax.random.uniform(k3, (1, HIDDEN), jnp.float32, -bound1, bound1)
    b2 = jax.random.uniform(k4, (1, N_ACTIONS), jnp.float32, -bound2, bound2)
    return w1, b1, w2, b2


if __name__ == "__main__":
    key = jax.random.PRNGKey(0)
    kx1, kx2, kp = jax.random.split(key, 3)

    w1, b1, w2, b2 = init_params(kp)
    params = pack_params(w1, b1, w2, b2)       # packed once, outside forward

    # Small batch (single tile, like online action selection).
    x_small = jax.random.normal(kx1, (8, N_STATES), dtype=jnp.float32)
    out_small = jax.block_until_ready(dqn_net_forward(params, x_small))
    ref_small = jnp.tanh(x_small @ w1.T + b1) @ w2.T + b2
    assert out_small.shape == (8, N_ACTIONS)
    assert jnp.allclose(out_small, ref_small, atol=1e-5, rtol=1e-4)

    # Larger, non-multiple-of-tile batch (exercises 2-step parallel grid + padding).
    x_big = jax.random.normal(kx2, (1037, N_STATES), dtype=jnp.float32)
    out_big = jax.block_until_ready(dqn_net_forward(params, x_big))
    ref_big = jnp.tanh(x_big @ w1.T + b1) @ w2.T + b2
    assert out_big.shape == (1037, N_ACTIONS)
    assert jnp.allclose(out_big, ref_big, atol=1e-5, rtol=1e-4)

    print("KERNEL_OK")
</pallas_src>

<mosaic_0001>
module attributes {stable_mosaic.version = 11 : i64} {
  func.func @dqn_net_kernel(%arg0: i32, %arg1: memref<4x128xf32, #tpu.memory_space<vmem>>, %arg2: memref<72xf32, #tpu.memory_space<smem>>, %arg3: memref<2x128xf32, #tpu.memory_space<vmem>>) attributes {dimension_semantics = [#tpu.dimension_semantics<parallel>], iteration_bounds = array<i64: 1>, scalar_prefetch = 0 : i64, scratch_operands = 0 : i64, tpu.core_type = #tpu.core_type<tc>, window_params = [{transform_indices = @transform_0, window_bounds = array<i64: 4, 128>}, {transform_indices = @transform_1, window_bounds = array<i64: 72>}, {transform_indices = @transform_2, window_bounds = array<i64: 2, 128>}]} {
    %c0 = arith.constant 0 : index
    %c0_0 = arith.constant 0 : index
    %0 = vector.load %arg1[%c0, %c0_0] : memref<4x128xf32, #tpu.memory_space<vmem>>, vector<1x128xf32>
    %c1 = arith.constant 1 : index
    %c0_1 = arith.constant 0 : index
    %1 = vector.load %arg1[%c1, %c0_1] : memref<4x128xf32, #tpu.memory_space<vmem>>, vector<1x128xf32>
    %c2 = arith.constant 2 : index
    %c0_2 = arith.constant 0 : index
    %2 = vector.load %arg1[%c2, %c0_2] : memref<4x128xf32, #tpu.memory_space<vmem>>, vector<1x128xf32>
    %c3 = arith.constant 3 : index
    %c0_3 = arith.constant 0 : index
    %3 = vector.load %arg1[%c3, %c0_3] : memref<4x128xf32, #tpu.memory_space<vmem>>, vector<1x128xf32>
    %c0_4 = arith.constant 0 : index
    %4 = memref.load %arg2[%c0_4] : memref<72xf32, #tpu.memory_space<smem>>
    %5 = vector.broadcast %4 : f32 to vector<1x128xf32>
    %6 = arith.mulf %0, %5 : vector<1x128xf32>
    %c1_5 = arith.constant 1 : index
    %7 = memref.load %arg2[%c1_5] : memref<72xf32, #tpu.memory_space<smem>>
    %8 = vector.broadcast %7 : f32 to vector<1x128xf32>
    %9 = arith.mulf %1, %8 : vector<1x128xf32>
    %10 = arith.addf %6, %9 : vector<1x128xf32>
    %c2_6 = arith.constant 2 : index
    %11 = memref.load %arg2[%c2_6] : memref<72xf32, #tpu.memory_space<smem>>
    %12 = vector.broadcast %11 : f32 to vector<1x128xf32>
    %13 = arith.mulf %2, %12 : vector<1x128xf32>
    %14 = arith.addf %10, %13 : vector<1x128xf32>
    %c3_7 = arith.constant 3 : index
    %15 = memref.load %arg2[%c3_7] : memref<72xf32, #tpu.memory_space<smem>>
    %16 = vector.broadcast %15 : f32 to vector<1x128xf32>
    %17 = arith.mulf %3, %16 : vector<1x128xf32>
    %18 = arith.addf %14, %17 : vector<1x128xf32>
    %c40 = arith.constant 40 : index
    %19 = memref.load %arg2[%c40] : memref<72xf32, #tpu.memory_space<smem>>
    %20 = vector.broadcast %19 : f32 to vector<1x128xf32>
    %21 = arith.addf %18, %20 : vector<1x128xf32>
    %22 = math.tanh %21 : vector<1x128xf32>
    %c4 = arith.constant 4 : index
    %23 = memref.load %arg2[%c4] : memref<72xf32, #tpu.memory_space<smem>>
    %24 = vector.broadcast %23 : f32 to vector<1x128xf32>
    %25 = arith.mulf %0, %24 : vector<1x128xf32>
    %c5 = arith.constant 5 : index
    %26 = memref.load %arg2[%c5] : memref<72xf32, #tpu.memory_space<smem>>
    %27 = vector.broadcast %26 : f32 to vector<1x128xf32>
    %28 = arith.mulf %1, %27 : vector<1x128xf32>
    %29 = arith.addf %25, %28 : vector<1x128xf32>
    %c6 = arith.constant 6 : index
    %30 = memref.load %arg2[%c6] : memref<72xf32, #tpu.memory_space<smem>>
    %31 = vector.broadcast %30 : f32 to vector<1x128xf32>
    %32 = arith.mulf %2, %31 : vector<1x128xf32>
    %33 = arith.addf %29, %32 : vector<1x128xf32>
    %c7 = arith.constant 7 : index
    %34 = memref.load %arg2[%c7] : memref<72xf32, #tpu.memory_space<smem>>
    %35 = vector.broadcast %34 : f32 to vector<1x128xf32>
    %36 = arith.mulf %3, %35 : vector<1x128xf32>
    %37 = arith.addf %33, %36 : vector<1x128xf32>
    %c41 = arith.constant 41 : index
    %38 = memref.load %arg2[%c41] : memref<72xf32, #tpu.memory_space<smem>>
    %39 = vector.broadcast %38 : f32 to vector<1x128xf32>
    %40 = arith.addf %37, %39 : vector<1x128xf32>
    %41 = math.tanh %40 : vector<1x128xf32>
    %c8 = arith.constant 8 : index
    %42 = memref.load %arg2[%c8] : memref<72xf32, #tpu.memory_space<smem>>
    %43 = vector.broadcast %42 : f32 to vector<1x128xf32>
    %44 = arith.mulf %0, %43 : vector<1x128xf32>
    %c9 = arith.constant 9 : index
    %45 = memref.load %arg2[%c9] : memref<72xf32, #tpu.memory_space<smem>>
    %46 = vector.broadcast %45 : f32 to vector<1x128xf32>
    %47 = arith.mulf %1, %46 : vector<1x128xf32>
    %48 = arith.addf %44, %47 : vector<1x128xf32>
    %c10 = arith.constant 10 : index
    %49 = memref.load %arg2[%c10] : memref<72xf32, #tpu.memory_space<smem>>
    %50 = vector.broadcast %49 : f32 to vector<1x128xf32>
    %51 = arith.mulf %2, %50 : vector<1x128xf32>
    %52 = arith.addf %48, %51 : vector<1x128xf32>
    %c11 = arith.constant 11 : index
    %53 = memref.load %arg2[%c11] : memref<72xf32, #tpu.memory_space<smem>>
    %54 = vector.broadcast %53 : f32 to vector<1x128xf32>
    %55 = arith.mulf %3, %54 : vector<1x128xf32>
    %56 = arith.addf %52, %55 : vector<1x128xf32>
    %c42 = arith.constant 42 : index
    %57 = memref.load %arg2[%c42] : memref<72xf32, #tpu.memory_space<smem>>
    %58 = vector.broadcast %57 : f32 to vector<1x128xf32>
    %59 = arith.addf %56, %58 : vector<1x128xf32>
    %60 = math.tanh %59 : vector<1x128xf32>
    %c12 = arith.constant 12 : index
    %61 = memref.load %arg2[%c12] : memref<72xf32, #tpu.memory_space<smem>>
    %62 = vector.broadcast %61 : f32 to vector<1x128xf32>
    %63 = arith.mulf %0, %62 : vector<1x128xf32>
    %c13 = arith.constant 13 : index
    %64 = memref.load %arg2[%c13] : memref<72xf32, #tpu.memory_space<smem>>
    %65 = vector.broadcast %64 : f32 to vector<1x128xf32>
    %66 = arith.mulf %1, %65 : vector<1x128xf32>
    %67 = arith.addf %63, %66 : vector<1x128xf32>
    %c14 = arith.constant 14 : index
    %68 = memref.load %arg2[%c14] : memref<72xf32, #tpu.memory_space<smem>>
    %69 = vector.broadcast %68 : f32 to vector<1x128xf32>
    %70 = arith.mulf %2, %69 : vector<1x128xf32>
    %71 = arith.addf %67, %70 : vector<1x128xf32>
    %c15 = arith.constant 15 : index
    %72 = memref.load %arg2[%c15] : memref<72xf32, #tpu.memory_space<smem>>
    %73 = vector.broadcast %72 : f32 to vector<1x128xf32>
    %74 = arith.mulf %3, %73 : vector<1x128xf32>
    %75 = arith.addf %71, %74 : vector<1x128xf32>
    %c43 = arith.constant 43 : index
    %76 = memref.load %arg2[%c43] : memref<72xf32, #tpu.memory_space<smem>>
    %77 = vector.broadcast %76 : f32 to vector<1x128xf32>
    %78 = arith.addf %75, %77 : vector<1x128xf32>
    %79 = math.tanh %78 : vector<1x128xf32>
    %c16 = arith.constant 16 : index
    %80 = memref.load %arg2[%c16] : memref<72xf32, #tpu.memory_space<smem>>
    %81 = vector.broadcast %80 : f32 to vector<1x128xf32>
    %82 = arith.mulf %0, %81 : vector<1x128xf32>
    %c17 = arith.constant 17 : index
    %83 = memref.load %arg2[%c17] : memref<72xf32, #tpu.memory_space<smem>>
    %84 = vector.broadcast %83 : f32 to vector<1x128xf32>
    %85 = arith.mulf %1, %84 : vector<1x128xf32>
    %86 = arith.addf %82, %85 : vector<1x128xf32>
    %c18 = arith.constant 18 : index
    %87 = memref.load %arg2[%c18] : memref<72xf32, #tpu.memory_space<smem>>
    %88 = vector.broadcast %87 : f32 to vector<1x128xf32>
    %89 = arith.mulf %2, %88 : vector<1x128xf32>
    %90 = arith.addf %86, %89 : vector<1x128xf32>
    %c19 = arith.constant 19 : index
    %91 = memref.load %arg2[%c19] : memref<72xf32, #tpu.memory_space<smem>>
    %92 = vector.broadcast %91 : f32 to vector<1x128xf32>
    %93 = arith.mulf %3, %92 : vector<1x128xf32>
    %94 = arith.addf %90, %93 : vector<1x128xf32>
    %c44 = arith.constant 44 : index
    %95 = memref.load %arg2[%c44] : memref<72xf32, #tpu.memory_space<smem>>
    %96 = vector.broadcast %95 : f32 to vector<1x128xf32>
    %97 = arith.addf %94, %96 : vector<1x128xf32>
    %98 = math.tanh %97 : vector<1x128xf32>
    %c20 = arith.constant 20 : index
    %99 = memref.load %arg2[%c20] : memref<72xf32, #tpu.memory_space<smem>>
    %100 = vector.broadcast %99 : f32 to vector<1x128xf32>
    %101 = arith.mulf %0, %100 : vector<1x128xf32>
    %c21 = arith.constant 21 : index
    %102 = memref.load %arg2[%c21] : memref<72xf32, #tpu.memory_space<smem>>
    %103 = vector.broadcast %102 : f32 to vector<1x128xf32>
    %104 = arith.mulf %1, %103 : vector<1x128xf32>
    %105 = arith.addf %101, %104 : vector<1x128xf32>
    %c22 = arith.constant 22 : index
    %106 = memref.load %arg2[%c22] : memref<72xf32, #tpu.memory_space<smem>>
    %107 = vector.broadcast %106 : f32 to vector<1x128xf32>
    %108 = arith.mulf %2, %107 : vector<1x128xf32>
    %109 = arith.addf %105, %108 : vector<1x128xf32>
    %c23 = arith.constant 23 : index
    %110 = memref.load %arg2[%c23] : memref<72xf32, #tpu.memory_space<smem>>
    %111 = vector.broadcast %110 : f32 to vector<1x128xf32>
    %112 = arith.mulf %3, %111 : vector<1x128xf32>
    %113 = arith.addf %109, %112 : vector<1x128xf32>
    %c45 = arith.constant 45 : index
    %114 = memref.load %arg2[%c45] : memref<72xf32, #tpu.memory_space<smem>>
    %115 = vector.broadcast %114 : f32 to vector<1x128xf32>
    %116 = arith.addf %113, %115 : vector<1x128xf32>
    %117 = math.tanh %116 : vector<1x128xf32>
    %c24 = arith.constant 24 : index
    %118 = memref.load %arg2[%c24] : memref<72xf32, #tpu.memory_space<smem>>
    %119 = vector.broadcast %118 : f32 to vector<1x128xf32>
    %120 = arith.mulf %0, %119 : vector<1x128xf32>
    %c25 = arith.constant 25 : index
    %121 = memref.load %arg2[%c25] : memref<72xf32, #tpu.memory_space<smem>>
    %122 = vector.broadcast %121 : f32 to vector<1x128xf32>
    %123 = arith.mulf %1, %122 : vector<1x128xf32>
    %124 = arith.addf %120, %123 : vector<1x128xf32>
    %c26 = arith.constant 26 : index
    %125 = memref.load %arg2[%c26] : memref<72xf32, #tpu.memory_space<smem>>
    %126 = vector.broadcast %125 : f32 to vector<1x128xf32>
    %127 = arith.mulf %2, %126 : vector<1x128xf32>
    %128 = arith.addf %124, %127 : vector<1x128xf32>
    %c27 = arith.constant 27 : index
    %129 = memref.load %arg2[%c27] : memref<72xf32, #tpu.memory_space<smem>>
    %130 = vector.broadcast %129 : f32 to vector<1x128xf32>
    %131 = arith.mulf %3, %130 : vector<1x128xf32>
    %132 = arith.addf %128, %131 : vector<1x128xf32>
    %c46 = arith.constant 46 : index
    %133 = memref.load %arg2[%c46] : memref<72xf32, #tpu.memory_space<smem>>
    %134 = vector.broadcast %133 : f32 to vector<1x128xf32>
    %135 = arith.addf %132, %134 : vector<1x128xf32>
    %136 = math.tanh %135 : vector<1x128xf32>
    %c28 = arith.constant 28 : index
    %137 = memref.load %arg2[%c28] : memref<72xf32, #tpu.memory_space<smem>>
    %138 = vector.broadcast %137 : f32 to vector<1x128xf32>
    %139 = arith.mulf %0, %138 : vector<1x128xf32>
    %c29 = arith.constant 29 : index
    %140 = memref.load %arg2[%c29] : memref<72xf32, #tpu.memory_space<smem>>
    %141 = vector.broadcast %140 : f32 to vector<1x128xf32>
    %142 = arith.mulf %1, %141 : vector<1x128xf32>
    %143 = arith.addf %139, %142 : vector<1x128xf32>
    %c30 = arith.constant 30 : index
    %144 = memref.load %arg2[%c30] : memref<72xf32, #tpu.memory_space<smem>>
    %145 = vector.broadcast %144 : f32 to vector<1x128xf32>
    %146 = arith.mulf %2, %145 : vector<1x128xf32>
    %147 = arith.addf %143, %146 : vector<1x128xf32>
    %c31 = arith.constant 31 : index
    %148 = memref.load %arg2[%c31] : memref<72xf32, #tpu.memory_space<smem>>
    %149 = vector.broadcast %148 : f32 to vector<1x128xf32>
    %150 = arith.mulf %3, %149 : vector<1x128xf32>
    %151 = arith.addf %147, %150 : vector<1x128xf32>
    %c47 = arith.constant 47 : index
    %152 = memref.load %arg2[%c47] : memref<72xf32, #tpu.memory_space<smem>>
    %153 = vector.broadcast %152 : f32 to vector<1x128xf32>
    %154 = arith.addf %151, %153 : vector<1x128xf32>
    %155 = math.tanh %154 : vector<1x128xf32>
    %c32 = arith.constant 32 : index
    %156 = memref.load %arg2[%c32] : memref<72xf32, #tpu.memory_space<smem>>
    %157 = vector.broadcast %156 : f32 to vector<1x128xf32>
    %158 = arith.mulf %0, %157 : vector<1x128xf32>
    %c33 = arith.constant 33 : index
    %159 = memref.load %arg2[%c33] : memref<72xf32, #tpu.memory_space<smem>>
    %160 = vector.broadcast %159 : f32 to vector<1x128xf32>
    %161 = arith.mulf %1, %160 : vector<1x128xf32>
    %162 = arith.addf %158, %161 : vector<1x128xf32>
    %c34 = arith.constant 34 : index
    %163 = memref.load %arg2[%c34] : memref<72xf32, #tpu.memory_space<smem>>
    %164 = vector.broadcast %163 : f32 to vector<1x128xf32>
    %165 = arith.mulf %2, %164 : vector<1x128xf32>
    %166 = arith.addf %162, %165 : vector<1x128xf32>
    %c35 = arith.constant 35 : index
    %167 = memref.load %arg2[%c35] : memref<72xf32, #tpu.memory_space<smem>>
    %168 = vector.broadcast %167 : f32 to vector<1x128xf32>
    %169 = arith.mulf %3, %168 : vector<1x128xf32>
    %170 = arith.addf %166, %169 : vector<1x128xf32>
    %c48 = arith.constant 48 : index
    %171 = memref.load %arg2[%c48] : memref<72xf32, #tpu.memory_space<smem>>
    %172 = vector.broadcast %171 : f32 to vector<1x128xf32>
    %173 = arith.addf %170, %172 : vector<1x128xf32>
    %174 = math.tanh %173 : vector<1x128xf32>
    %c36 = arith.constant 36 : index
    %175 = memref.load %arg2[%c36] : memref<72xf32, #tpu.memory_space<smem>>
    %176 = vector.broadcast %175 : f32 to vector<1x128xf32>
    %177 = arith.mulf %0, %176 : vector<1x128xf32>
    %c37 = arith.constant 37 : index
    %178 = memref.load %arg2[%c37] : memref<72xf32, #tpu.memory_space<smem>>
    %179 = vector.broadcast %178 : f32 to vector<1x128xf32>
    %180 = arith.mulf %1, %179 : vector<1x128xf32>
    %181 = arith.addf %177, %180 : vector<1x128xf32>
    %c38 = arith.constant 38 : index
    %182 = memref.load %arg2[%c38] : memref<72xf32, #tpu.memory_space<smem>>
    %183 = vector.broadcast %182 : f32 to vector<1x128xf32>
    %184 = arith.mulf %2, %183 : vector<1x128xf32>
    %185 = arith.addf %181, %184 : vector<1x128xf32>
    %c39 = arith.constant 39 : index
    %186 = memref.load %arg2[%c39] : memref<72xf32, #tpu.memory_space<smem>>
    %187 = vector.broadcast %186 : f32 to vector<1x128xf32>
    %188 = arith.mulf %3, %187 : vector<1x128xf32>
    %189 = arith.addf %185, %188 : vector<1x128xf32>
    %c49 = arith.constant 49 : index
    %190 = memref.load %arg2[%c49] : memref<72xf32, #tpu.memory_space<smem>>
    %191 = vector.broadcast %190 : f32 to vector<1x128xf32>
    %192 = arith.addf %189, %191 : vector<1x128xf32>
    %193 = math.tanh %192 : vector<1x128xf32>
    %c50 = arith.constant 50 : index
    %194 = memref.load %arg2[%c50] : memref<72xf32, #tpu.memory_space<smem>>
    %195 = vector.broadcast %194 : f32 to vector<1x128xf32>
    %196 = arith.mulf %22, %195 : vector<1x128xf32>
    %c51 = arith.constant 51 : index
    %197 = memref.load %arg2[%c51] : memref<72xf32, #tpu.memory_space<smem>>
    %198 = vector.broadcast %197 : f32 to vector<1x128xf32>
    %199 = arith.mulf %41, %198 : vector<1x128xf32>
    %200 = arith.addf %196, %199 : vector<1x128xf32>
    %c52 = arith.constant 52 : index
    %201 = memref.load %arg2[%c52] : memref<72xf32, #tpu.memory_space<smem>>
    %202 = vector.broadcast %201 : f32 to vector<1x128xf32>
    %203 = arith.mulf %60, %202 : vector<1x128xf32>
    %204 = arith.addf %200, %203 : vector<1x128xf32>
    %c53 = arith.constant 53 : index
    %205 = memref.load %arg2[%c53] : memref<72xf32, #tpu.memory_space<smem>>
    %206 = vector.broadcast %205 : f32 to vector<1x128xf32>
    %207 = arith.mulf %79, %206 : vector<1x128xf32>
    %208 = arith.addf %204, %207 : vector<1x128xf32>
    %c54 = arith.constant 54 : index
    %209 = memref.load %arg2[%c54] : memref<72xf32, #tpu.memory_space<smem>>
    %210 = vector.broadcast %209 : f32 to vector<1x128xf32>
    %211 = arith.mulf %98, %210 : vector<1x128xf32>
    %212 = arith.addf %208, %211 : vector<1x128xf32>
    %c55 = arith.constant 55 : index
    %213 = memref.load %arg2[%c55] : memref<72xf32, #tpu.memory_space<smem>>
    %214 = vector.broadcast %213 : f32 to vector<1x128xf32>
    %215 = arith.mulf %117, %214 : vector<1x128xf32>
    %216 = arith.addf %212, %215 : vector<1x128xf32>
    %c56 = arith.constant 56 : index
    %217 = memref.load %arg2[%c56] : memref<72xf32, #tpu.memory_space<smem>>
    %218 = vector.broadcast %217 : f32 to vector<1x128xf32>
    %219 = arith.mulf %136, %218 : vector<1x128xf32>
    %220 = arith.addf %216, %219 : vector<1x128xf32>
    %c57 = arith.constant 57 : index
    %221 = memref.load %arg2[%c57] : memref<72xf32, #tpu.memory_space<smem>>
    %222 = vector.broadcast %221 : f32 to vector<1x128xf32>
    %223 = arith.mulf %155, %222 : vector<1x128xf32>
    %224 = arith.addf %220, %223 : vector<1x128xf32>
    %c58 = arith.constant 58 : index
    %225 = memref.load %arg2[%c58] : memref<72xf32, #tpu.memory_space<smem>>
    %226 = vector.broadcast %225 : f32 to vector<1x128xf32>
    %227 = arith.mulf %174, %226 : vector<1x128xf32>
    %228 = arith.addf %224, %227 : vector<1x128xf32>
    %c59 = arith.constant 59 : index
    %229 = memref.load %arg2[%c59] : memref<72xf32, #tpu.memory_space<smem>>
    %230 = vector.broadcast %229 : f32 to vector<1x128xf32>
    %231 = arith.mulf %193, %230 : vector<1x128xf32>
    %232 = arith.addf %228, %231 : vector<1x128xf32>
    %c70 = arith.constant 70 : index
    %233 = memref.load %arg2[%c70] : memref<72xf32, #tpu.memory_space<smem>>
    %234 = vector.broadcast %233 : f32 to vector<1x128xf32>
    %235 = arith.addf %232, %234 : vector<1x128xf32>
    %c0_8 = arith.constant 0 : index
    %c0_9 = arith.constant 0 : index
    %236 = vector.load %arg3[%c0_8, %c0_9] : memref<2x128xf32, #tpu.memory_space<vmem>>, vector<1x128xf32>
    tpu.vector_store %arg3[%c0_8, %c0_9], %235 {strides = array<i32>} : memref<2x128xf32, #tpu.memory_space<vmem>>, vector<1x128xf32>,
    %c60 = arith.constant 60 : index
    %237 = memref.load %arg2[%c60] : memref<72xf32, #tpu.memory_space<smem>>
    %238 = vector.broadcast %237 : f32 to vector<1x128xf32>
    %239 = arith.mulf %22, %238 : vector<1x128xf32>
    %c61 = arith.constant 61 : index
    %240 = memref.load %arg2[%c61] : memref<72xf32, #tpu.memory_space<smem>>
    %241 = vector.broadcast %240 : f32 to vector<1x128xf32>
    %242 = arith.mulf %41, %241 : vector<1x128xf32>
    %243 = arith.addf %239, %242 : vector<1x128xf32>
    %c62 = arith.constant 62 : index
    %244 = memref.load %arg2[%c62] : memref<72xf32, #tpu.memory_space<smem>>
    %245 = vector.broadcast %244 : f32 to vector<1x128xf32>
    %246 = arith.mulf %60, %245 : vector<1x128xf32>
    %247 = arith.addf %243, %246 : vector<1x128xf32>
    %c63 = arith.constant 63 : index
    %248 = memref.load %arg2[%c63] : memref<72xf32, #tpu.memory_space<smem>>
    %249 = vector.broadcast %248 : f32 to vector<1x128xf32>
    %250 = arith.mulf %79, %249 : vector<1x128xf32>
    %251 = arith.addf %247, %250 : vector<1x128xf32>
    %c64 = arith.constant 64 : index
    %252 = memref.load %arg2[%c64] : memref<72xf32, #tpu.memory_space<smem>>
    %253 = vector.broadcast %252 : f32 to vector<1x128xf32>
    %254 = arith.mulf %98, %253 : vector<1x128xf32>
    %255 = arith.addf %251, %254 : vector<1x128xf32>
    %c65 = arith.constant 65 : index
    %256 = memref.load %arg2[%c65] : memref<72xf32, #tpu.memory_space<smem>>
    %257 = vector.broadcast %256 : f32 to vector<1x128xf32>
    %258 = arith.mulf %117, %257 : vector<1x128xf32>
    %259 = arith.addf %255, %258 : vector<1x128xf32>
    %c66 = arith.constant 66 : index
    %260 = memref.load %arg2[%c66] : memref<72xf32, #tpu.memory_space<smem>>
    %261 = vector.broadcast %260 : f32 to vector<1x128xf32>
    %262 = arith.mulf %136, %261 : vector<1x128xf32>
    %263 = arith.addf %259, %262 : vector<1x128xf32>
    %c67 = arith.constant 67 : index
    %264 = memref.load %arg2[%c67] : memref<72xf32, #tpu.memory_space<smem>>
    %265 = vector.broadcast %264 : f32 to vector<1x128xf32>
    %266 = arith.mulf %155, %265 : vector<1x128xf32>
    %267 = arith.addf %263, %266 : vector<1x128xf32>
    %c68 = arith.constant 68 : index
    %268 = memref.load %arg2[%c68] : memref<72xf32, #tpu.memory_space<smem>>
    %269 = vector.broadcast %268 : f32 to vector<1x128xf32>
    %270 = arith.mulf %174, %269 : vector<1x128xf32>
    %271 = arith.addf %267, %270 : vector<1x128xf32>
    %c69 = arith.constant 69 : index
    %272 = memref.load %arg2[%c69] : memref<72xf32, #tpu.memory_space<smem>>
    %273 = vector.broadcast %272 : f32 to vector<1x128xf32>
    %274 = arith.mulf %193, %273 : vector<1x128xf32>
    %275 = arith.addf %271, %274 : vector<1x128xf32>
    %c71 = arith.constant 71 : index
    %276 = memref.load %arg2[%c71] : memref<72xf32, #tpu.memory_space<smem>>
    %277 = vector.broadcast %276 : f32 to vector<1x128xf32>
    %278 = arith.addf %275, %277 : vector<1x128xf32>
    %c1_10 = arith.constant 1 : index
    %c0_11 = arith.constant 0 : index
    %279 = vector.load %arg3[%c1_10, %c0_11] : memref<2x128xf32, #tpu.memory_space<vmem>>, vector<1x128xf32>
    tpu.vector_store %arg3[%c1_10, %c0_11], %278 {strides = array<i32>} : memref<2x128xf32, #tpu.memory_space<vmem>>, vector<1x128xf32>,
    return
  }
  func.func @transform_0(%arg0: i32) -> (i32, i32) {
    %c0_i32 = arith.constant 0 : i32
    %c0_i32_0 = arith.constant 0 : i32
    return %c0_i32, %arg0 : i32, i32
  }
  func.func @transform_1(%arg0: i32) -> i32 {
    %c0_i32 = arith.constant 0 : i32
    %c0_i32_0 = arith.constant 0 : i32
    return %c0_i32 : i32
  }
  func.func @transform_2(%arg0: i32) -> (i32, i32) {
    %c0_i32 = arith.constant 0 : i32
    %c0_i32_0 = arith.constant 0 : i32
    return %c0_i32, %arg0 : i32, i32
  }
}

</mosaic_0001>

<llo_original>
// kernel: dqn_net_forward.1
$region0: #{dqn_net_forward.1}
  #allocation0 [shape = 'u32[]', space=smem, size = 0x4, offset = 0x4, fixed_abs, tag = 'smem constant byte address 0x4 - core index']
  #allocation1 [shape = 'u32[144,128]{1,0:T(1,128)}', space=vmem, size = 0x12000, scoped, tag = 'internal scratch']
  %s0 = inlined_call_operand.vmem [shape: f32[4,128], index: 0, kind: input, shape index: {}]
  %s1 = inlined_call_operand.vmem [shape: f32[72], index: 1, kind: input, shape index: {}]
  %s2 = inlined_call_operand.vmem [shape: f32[2,128], index: 2, kind: output, shape index: {}]
  %s3 = sld [smem:[#allocation0]]
  $region22: #{dqn_net_forward.1} parent=0
    _
  %s5 = ssub.s32 1, %s3
  %s6 = scalar_select 0, %s5, %s3
  $region1: #{dqn_net_forward.1} parent=0
    #allocation2 [shape = 'u8[512]{0}', space=smem, size = 0x200, scoped, tag = 'input window, operand 1, single buffered']
    #allocation3 [shape = 's32[1]{0}', space=sflag, size = 0x4, scoped, tag = 'scoped memory for dqn_net_forward.1']
    %7 = vsyncpa [#allocation3], 0
    // Predicated region
    $region2: #{dqn_net_forward.1} parent=1 // pred_check
      _
    $region3: #{dqn_net_forward.1} parent=1 // pred_check_branch
      %9 = sbr.rel (0) target = $region5
    $region4: #{dqn_net_forward.1} parent=1 // pred_region
      _
    $region5: #{dqn_net_forward.1} parent=1 // pred_fallthru
      _
    // Predicated region
    $region6: #{dqn_net_forward.1} parent=1 // pred_check
      _
    $region7: #{dqn_net_forward.1} parent=1 // pred_check_branch
      %11 = sbr.rel (0) target = $region9
    $region8: #{dqn_net_forward.1} parent=1 // pred_region
      %s13 = ssub.s32 16, 16
      %14 = vsyncadd [#allocation3], %s13
      %s16 = sshll.u32 %s1, 4
      %s17 = int_to_ptr.vmem [resolvable:$true] %s16
      %19 = dma.vmem_to_smem %s17, 16, [#allocation2], [#allocation3]
    $region9: #{dqn_net_forward.1} parent=1 // pred_fallthru
      _
    // Predicated region
    $region10: #{dqn_net_forward.1} parent=1 // pred_check
      _
    $region11: #{dqn_net_forward.1} parent=1 // pred_check_branch
      %21 = sbr.rel (0) target = $region13
    $region12: #{dqn_net_forward.1} parent=1 // pred_region
      %22 = dma.done [#allocation3], 16
    $region13: #{dqn_net_forward.1} parent=1 // pred_fallthru
      _
    %23 = sfence
    %v24 = vld [vmem:[%s0] sm:$0x1]
    %v25 = vld [vmem:[%s0 + $0x1] sm:$0x1]
    %v26 = vld [vmem:[%s0 + $0x2] sm:$0x1]
    %v27 = vld [vmem:[%s0 + $0x3] sm:$0x1]
    %s28 = sld [smem:[#allocation2]]
    %v29 = vstv %s28
    %v30 = vmul.f32 %v24, %v29
    %s31 = sld [smem:[#allocation2 + $0x1]]
    %v32 = vstv %s31
    %v33 = vmul.f32 %v25, %v32
    %v34 = vadd.f32 %v30, %v33
    %s35 = sld [smem:[#allocation2 + $0x2]]
    %v36 = vstv %s35
    %v37 = vmul.f32 %v26, %v36
    %v38 = vadd.f32 %v34, %v37
    %s39 = sld [smem:[#allocation2 + $0x3]]
    %v40 = vstv %s39
    %v41 = vmul.f32 %v27, %v40
    %v42 = vadd.f32 %v38, %v41
    %s43 = sld [smem:[#allocation2 + $0x28]]
    %v44 = vstv %s43
    %v45 = vadd.f32 %v42, %v44
    %v46 = vtanh.pop %v45
    %s47 = sld [smem:[#allocation2 + $0x4]]
    %v48 = vstv %s47
    %v49 = vmul.f32 %v24, %v48
    %s50 = sld [smem:[#allocation2 + $0x5]]
    %v51 = vstv %s50
    %v52 = vmul.f32 %v25, %v51
    %v53 = vadd.f32 %v49, %v52
    %s54 = sld [smem:[#allocation2 + $0x6]]
    %v55 = vstv %s54
    %v56 = vmul.f32 %v26, %v55
    %v57 = vadd.f32 %v53, %v56
    %s58 = sld [smem:[#allocation2 + $0x7]]
    %v59 = vstv %s58
    %v60 = vmul.f32 %v27, %v59
    %v61 = vadd.f32 %v57, %v60
    %s62 = sld [smem:[#allocation2 + $0x29]]
    %v63 = vstv %s62
    %v64 = vadd.f32 %v61, %v63
    %v65 = vtanh.pop %v64
    %s66 = sld [smem:[#allocation2 + $0x8]]
    %v67 = vstv %s66
    %v68 = vmul.f32 %v24, %v67
    %s69 = sld [smem:[#allocation2 + $0x9]]
    %v70 = vstv %s69
    %v71 = vmul.f32 %v25, %v70
    %v72 = vadd.f32 %v68, %v71
    %s73 = sld [smem:[#allocation2 + $0xa]]
    %v74 = vstv %s73
    %v75 = vmul.f32 %v26, %v74
    %v76 = vadd.f32 %v72, %v75
    %s77 = sld [smem:[#allocation2 + $0xb]]
    %v78 = vstv %s77
    %v79 = vmul.f32 %v27, %v78
    %v80 = vadd.f32 %v76, %v79
    %s81 = sld [smem:[#allocation2 + $0x2a]]
    %v82 = vstv %s81
    %v83 = vadd.f32 %v80, %v82
    %v84 = vtanh.pop %v83
    %s85 = sld [smem:[#allocation2 + $0xc]]
    %v86 = vstv %s85
    %v87 = vmul.f32 %v24, %v86
    %s88 = sld [smem:[#allocation2 + $0xd]]
    %v89 = vstv %s88
    %v90 = vmul.f32 %v25, %v89
    %v91 = vadd.f32 %v87, %v90
    %s92 = sld [smem:[#allocation2 + $0xe]]
    %v93 = vstv %s92
    %v94 = vmul.f32 %v26, %v93
    %v95 = vadd.f32 %v91, %v94
    %s96 = sld [smem:[#allocation2 + $0xf]]
    %v97 = vstv %s96
    %v98 = vmul.f32 %v27, %v97
    %v99 = vadd.f32 %v95, %v98
    %s100 = sld [smem:[#allocation2 + $0x2b]]
    %v101 = vstv %s100
    %v102 = vadd.f32 %v99, %v101
    %v103 = vtanh.pop %v102
    %s104 = sld [smem:[#allocation2 + $0x10]]
    %v105 = vstv %s104
    %v106 = vmul.f32 %v24, %v105
    %s107 = sld [smem:[#allocation2 + $0x11]]
    %v108 = vstv %s107
    %v109 = vmul.f32 %v25, %v108
    %v110 = vadd.f32 %v106, %v109
    %s111 = sld [smem:[#allocation2 + $0x12]]
    %v112 = vstv %s111
    %v113 = vmul.f32 %v26, %v112
    %v114 = vadd.f32 %v110, %v113
    %s115 = sld [smem:[#allocation2 + $0x13]]
    %v116 = vstv %s115
    %v117 = vmul.f32 %v27, %v116
    %v118 = vadd.f32 %v114, %v117
    %s119 = sld [smem:[#allocation2 + $0x2c]]
    %v120 = vstv %s119
    %v121 = vadd.f32 %v118, %v120
    %v122 = vtanh.pop %v121
    %s123 = sld [smem:[#allocation2 + $0x14]]
    %v124 = vstv %s123
    %v125 = vmul.f32 %v24, %v124
    %s126 = sld [smem:[#allocation2 + $0x15]]
    %v127 = vstv %s126
    %v128 = vmul.f32 %v25, %v127
    %v129 = vadd.f32 %v125, %v128
    %s130 = sld [smem:[#allocation2 + $0x16]]
    %v131 = vstv %s130
    %v132 = vmul.f32 %v26, %v131
    %v133 = vadd.f32 %v129, %v132
    %s134 = sld [smem:[#allocation2 + $0x17]]
    %v135 = vstv %s134
    %v136 = vmul.f32 %v27, %v135
    %v137 = vadd.f32 %v133, %v136
    %s138 = sld [smem:[#allocation2 + $0x2d]]
    %v139 = vstv %s138
    %v140 = vadd.f32 %v137, %v139
    %v141 = vtanh.pop %v140
    %s142 = sld [smem:[#allocation2 + $0x18]]
    %v143 = vstv %s142
    %v144 = vmul.f32 %v24, %v143
    %s145 = sld [smem:[#allocation2 + $0x19]]
    %v146 = vstv %s145
    %v147 = vmul.f32 %v25, %v146
    %v148 = vadd.f32 %v144, %v147
    %s149 = sld [smem:[#allocation2 + $0x1a]]
    %v150 = vstv %s149
    %v151 = vmul.f32 %v26, %v150
    %v152 = vadd.f32 %v148, %v151
    %s153 = sld [smem:[#allocation2 + $0x1b]]
    %v154 = vstv %s153
    %v155 = vmul.f32 %v27, %v154
    %v156 = vadd.f32 %v152, %v155
    %s157 = sld [smem:[#allocation2 + $0x2e]]
    %v158 = vstv %s157
    %v159 = vadd.f32 %v156, %v158
    %v160 = vtanh.pop %v159
    %s161 = sld [smem:[#allocation2 + $0x1c]]
    %v162 = vstv %s161
    %v163 = vmul.f32 %v24, %v162
    %s164 = sld [smem:[#allocation2 + $0x1d]]
    %v165 = vstv %s164
    %v166 = vmul.f32 %v25, %v165
    %v167 = vadd.f32 %v163, %v166
    %s168 = sld [smem:[#allocation2 + $0x1e]]
    %v169 = vstv %s168
    %v170 = vmul.f32 %v26, %v169
    %v171 = vadd.f32 %v167, %v170
    %s172 = sld [smem:[#allocation2 + $0x1f]]
    %v173 = vstv %s172
    %v174 = vmul.f32 %v27, %v173
    %v175 = vadd.f32 %v171, %v174
    %s176 = sld [smem:[#allocation2 + $0x2f]]
    %v177 = vstv %s176
    %v178 = vadd.f32 %v175, %v177
    %v179 = vtanh.pop %v178
    %s180 = sld [smem:[#allocation2 + $0x20]]
    %v181 = vstv %s180
    %v182 = vmul.f32 %v24, %v181
    %s183 = sld [smem:[#allocation2 + $0x21]]
    %v184 = vstv %s183
    %v185 = vmul.f32 %v25, %v184
    %v186 = vadd.f32 %v182, %v185
    %s187 = sld [smem:[#allocation2 + $0x22]]
    %v188 = vstv %s187
    %v189 = vmul.f32 %v26, %v188
    %v190 = vadd.f32 %v186, %v189
    %s191 = sld [smem:[#allocation2 + $0x23]]
    %v192 = vstv %s191
    %v193 = vmul.f32 %v27, %v192
    %v194 = vadd.f32 %v190, %v193
    %s195 = sld [smem:[#allocation2 + $0x30]]
    %v196 = vstv %s195
    %v197 = vadd.f32 %v194, %v196
    %v198 = vtanh.pop %v197
    %s199 = sld [smem:[#allocation2 + $0x24]]
    %v200 = vstv %s199
    %v201 = vmul.f32 %v24, %v200
    %s202 = sld [smem:[#allocation2 + $0x25]]
    %v203 = vstv %s202
    %v204 = vmul.f32 %v25, %v203
    %v205 = vadd.f32 %v201, %v204
    %s206 = sld [smem:[#allocation2 + $0x26]]
    %v207 = vstv %s206
    %v208 = vmul.f32 %v26, %v207
    %v209 = vadd.f32 %v205, %v208
    %s210 = sld [smem:[#allocation2 + $0x27]]
    %v211 = vstv %s210
    %v212 = vmul.f32 %v27, %v211
    %v213 = vadd.f32 %v209, %v212
    %s214 = sld [smem:[#allocation2 + $0x31]]
    %v215 = vstv %s214
    %v216 = vadd.f32 %v213, %v215
    %v217 = vtanh.pop %v216
    %s218 = sld [smem:[#allocation2 + $0x32]]
    %v219 = vstv %s218
    %v220 = vmul.f32 %v46, %v219
    %s221 = sld [smem:[#allocation2 + $0x33]]
    %v222 = vstv %s221
    %v223 = vmul.f32 %v65, %v222
    %v224 = vadd.f32 %v220, %v223
    %s225 = sld [smem:[#allocation2 + $0x34]]
    %v226 = vstv %s225
    %v227 = vmul.f32 %v84, %v226
    %v228 = vadd.f32 %v224, %v227
    %s229 = sld [smem:[#allocation2 + $0x35]]
    %v230 = vstv %s229
    %v231 = vmul.f32 %v103, %v230
    %v232 = vadd.f32 %v228, %v231
    %s233 = sld [smem:[#allocation2 + $0x36]]
    %v234 = vstv %s233
    %v235 = vmul.f32 %v122, %v234
    %v236 = vadd.f32 %v232, %v235
    %s237 = sld [smem:[#allocation2 + $0x37]]
    %v238 = vstv %s237
    %v239 = vmul.f32 %v141, %v238
    %v240 = vadd.f32 %v236, %v239
    %s241 = sld [smem:[#allocation2 + $0x38]]
    %v242 = vstv %s241
    %v243 = vmul.f32 %v160, %v242
    %v244 = vadd.f32 %v240, %v243
    %s245 = sld [smem:[#allocation2 + $0x39]]
    %v246 = vstv %s245
    %v247 = vmul.f32 %v179, %v246
    %v248 = vadd.f32 %v244, %v247
    %s249 = sld [smem:[#allocation2 + $0x3a]]
    %v250 = vstv %s249
    %v251 = vmul.f32 %v198, %v250
    %v252 = vadd.f32 %v248, %v251
    %s253 = sld [smem:[#allocation2 + $0x3b]]
    %v254 = vstv %s253
    %v255 = vmul.f32 %v217, %v254
    %v256 = vadd.f32 %v252, %v255
    %s257 = sld [smem:[#allocation2 + $0x46]]
    %v258 = vstv %s257
    %v259 = vadd.f32 %v256, %v258
    %260 = vst [vmem:[%s2] sm:$0x1] %v259
    %s261 = sld [smem:[#allocation2 + $0x3c]]
    %v262 = vstv %s261
    %v263 = vmul.f32 %v46, %v262
    %s264 = sld [smem:[#allocation2 + $0x3d]]
    %v265 = vstv %s264
    %v266 = vmul.f32 %v65, %v265
    %v267 = vadd.f32 %v263, %v266
    %s268 = sld [smem:[#allocation2 + $0x3e]]
    %v269 = vstv %s268
    %v270 = vmul.f32 %v84, %v269
    %v271 = vadd.f32 %v267, %v270
    %s272 = sld [smem:[#allocation2 + $0x3f]]
    %v273 = vstv %s272
    %v274 = vmul.f32 %v103, %v273
    %v275 = vadd.f32 %v271, %v274
    %s276 = sld [smem:[#allocation2 + $0x40]]
    %v277 = vstv %s276
    %v278 = vmul.f32 %v122, %v277
    %v279 = vadd.f32 %v275, %v278
    %s280 = sld [smem:[#allocation2 + $0x41]]
    %v281 = vstv %s280
    %v282 = vmul.f32 %v141, %v281
    %v283 = vadd.f32 %v279, %v282
    %s284 = sld [smem:[#allocation2 + $0x42]]
    %v285 = vstv %s284
    %v286 = vmul.f32 %v160, %v285
    %v287 = vadd.f32 %v283, %v286
    %s288 = sld [smem:[#allocation2 + $0x43]]
    %v289 = vstv %s288
    %v290 = vmul.f32 %v179, %v289
    %v291 = vadd.f32 %v287, %v290
    %s292 = sld [smem:[#allocation2 + $0x44]]
    %v293 = vstv %s292
    %v294 = vmul.f32 %v198, %v293
    %v295 = vadd.f32 %v291, %v294
    %s296 = sld [smem:[#allocation2 + $0x45]]
    %v297 = vstv %s296
    %v298 = vmul.f32 %v217, %v297
    %v299 = vadd.f32 %v295, %v298
    %s300 = sld [smem:[#allocation2 + $0x47]]
    %v301 = vstv %s300
    %v302 = vadd.f32 %v299, %v301
    %303 = vst [vmem:[%s2 + $0x1] sm:$0x1] %v302
    // Predicated region
    $region14: #{dqn_net_forward.1} parent=1 // pred_check
      _
    $region15: #{dqn_net_forward.1} parent=1 // pred_check_branch
      %305 = sbr.rel (0) target = $region17
    $region16: #{dqn_net_forward.1} parent=1 // pred_region
      _
    $region17: #{dqn_net_forward.1} parent=1 // pred_fallthru
      _
    // Predicated region
    $region18: #{dqn_net_forward.1} parent=1 // pred_check
      _
    $region19: #{dqn_net_forward.1} parent=1 // pred_check_branch
      %307 = sbr.rel (0) target = $region21
    $region20: #{dqn_net_forward.1} parent=1 // pred_region
      _
    $region21: #{dqn_net_forward.1} parent=1 // pred_fallthru
      _
    %308 = vsyncpa [#allocation3], 1

</llo_original>
